<compile_context>
chip_gen: v7x
topology: tpu7x:2x2x1
jax: 0.10.0
libtpu: 0.0.40
codegen_flags: <defaults>
</compile_context>

<pallas_src>
import jax
import jax.numpy as jnp
from jax import lax
from jax.experimental import pallas as pl
from jax.experimental.pallas import tpu as pltpu


def _cls_kernel(ids_ref, tab_ref, w_ref, b_ref, out_ref):
    # ids_ref: [TB, S] i32        tab_ref: [V_PAD, E] bf16
    # w_ref:   [E, C_PAD] bf16    b_ref:   [1, C_PAD] f32
    # out_ref: [TB, 128] i32  (predicted class index broadcast across lanes)
    tb, s_len = ids_ref.shape
    v_pad = tab_ref.shape[0]
    c_pad = w_ref.shape[1]

    ids = ids_ref[...]  # [TB, S] int32

    # Fused embedding lookup + mean pool:
    #   mean_s table[ids[b, s]]  ==  (counts[b, :] / S) @ table
    # counts built with f32 VPU compares/adds (no bf16 VPU needed -> v5e-safe).
    iota_v = lax.broadcasted_iota(jnp.int32, (tb, v_pad), 1)
    counts = jnp.zeros((tb, v_pad), jnp.float32)
    for s in range(s_len):  # S is small & static; unrolled VPU compares
        counts = counts + (ids[:, s : s + 1] == iota_v).astype(jnp.float32)

    # MXU matmul #1: [TB, V_PAD] x [V_PAD, E] -> pooled embeddings, f32 accumulate.
    pooled = jnp.dot(
        counts.astype(jnp.bfloat16), tab_ref[...],
        preferred_element_type=jnp.float32,
    ) * (1.0 / s_len)  # [TB, E] f32

    # MXU matmul #2: cls_head linear layer, f32 accumulate + f32 bias.
    logits = jnp.dot(
        pooled.astype(jnp.bfloat16), w_ref[...],
        preferred_element_type=jnp.float32,
    ) + b_ref[...]  # [TB, C_PAD] f32 (pad lanes carry -1e30 bias -> never win)

    # argmax(dim=-1): softmax is strictly monotonic, so argmax(softmax(x)) == argmax(x);
    # first-max index convention matches torch.argmax.
    cls_ids = lax.broadcasted_iota(jnp.int32, logits.shape, 1)
    is_max = logits == jnp.max(logits, axis=-1, keepdims=True)
    idx = jnp.min(jnp.where(is_max, cls_ids, c_pad), axis=-1, keepdims=True)  # [TB, 1]

    # Lane-dense store: broadcast the per-row index across all 128 lanes.
    out_ref[...] = jnp.broadcast_to(idx, out_ref.shape).astype(jnp.int32)


def classification_forward(token_ids, embed_table, cls_w, cls_b, *, tb=8):
    """token_ids: [B, S] i32, embed_table: [V, E] f32, cls_w: [E, C] f32,
    cls_b: [1, C] f32 -> predicted class indices [B] i32."""
    B, S = token_ids.shape
    V, E = embed_table.shape
    _, C = cls_w.shape
    assert B % tb == 0, "demo wrapper requires B to be a multiple of the batch tile"
    # NOTE: for production-sized B use tb=128 (v5e) / 256 (v6e, v7x) to feed the MXU,
    # and keep 2 buffers of the (tb, S) id tile well under the scoped VMEM limit
    # (v7x has half the VMEM of v5e/v6e).

    v_pad = ((V + 127) // 128) * 128
    c_pad = ((C + 127) // 128) * 128

    # One-time parameter prep (would be done at checkpoint-load time):
    # bf16 table/weights, zero-pad vocab rows, -1e30 bias on padded class lanes.
    tab = jnp.zeros((v_pad, E), jnp.bfloat16).at[:V, :].set(
        embed_table.astype(jnp.bfloat16))
    w = jnp.zeros((E, c_pad), jnp.bfloat16).at[:, :C].set(
        cls_w.astype(jnp.bfloat16))
    b = jnp.full((1, c_pad), -1e30, jnp.float32).at[:, :C].set(
        cls_b.astype(jnp.float32))

    out = pl.pallas_call(
        _cls_kernel,
        out_shape=jax.ShapeDtypeStruct((B, 128), jnp.int32),
        grid=(B // tb,),
        in_specs=[
            pl.BlockSpec((tb, S), lambda i: (i, 0)),        # streamed ids
            pl.BlockSpec((v_pad, E), lambda i: (0, 0)),     # resident table
            pl.BlockSpec((E, c_pad), lambda i: (0, 0)),     # resident cls weight
            pl.BlockSpec((1, c_pad), lambda i: (0, 0)),     # resident cls bias
        ],
        out_specs=pl.BlockSpec((tb, 128), lambda i: (i, 0)),
        compiler_params=pltpu.CompilerParams(
            dimension_semantics=("parallel",)),
    )(token_ids, tab, w, b)
    return out[:, 0]


if __name__ == "__main__":
    # Small deterministic synthetic configuration consistent with the module.
    B, S, E, C, V = 16, 8, 32, 8, 64  # batch, seq, embedding_dim, n_classes, vocab
    TB = 8                            # batch tile -> grid of 2 pipelined steps

    key = jax.random.PRNGKey(0)
    k_ids, k_tab, k_w, k_b = jax.random.split(key, 4)

    # "in_text" stand-in: tokenized ids [B, S]
    token_ids = jax.random.randint(k_ids, (B, S), 0, V, dtype=jnp.int32)

    # Deterministic parameters (synthetic checkpoint).
    embed_table = jax.random.normal(k_tab, (V, E), dtype=jnp.float32) * 0.1
    cls_w = jax.random.normal(k_w, (E, C), dtype=jnp.float32) * 0.2
    cls_b = jax.random.normal(k_b, (1, C), dtype=jnp.float32) * 0.05

    # class_mapping from the synthetic "checkpoint" and its inversion.
    class_mapping = {f"label_{i}": i for i in range(C)}
    inverted_class_mapping = {v: k for k, v in class_mapping.items()}

    pred_idx = classification_forward(token_ids, embed_table, cls_w, cls_b, tb=TB)
    pred_idx = jax.block_until_ready(pred_idx)

    # Reference in plain JAX (same bf16 parameter rounding as the kernel);
    # softmax->argmax == argmax of logits.
    tab_bf = embed_table.astype(jnp.bfloat16).astype(jnp.float32)
    w_bf = cls_w.astype(jnp.bfloat16).astype(jnp.float32)
    pooled_ref = jnp.take(tab_bf, token_ids, axis=0).mean(axis=1)
    pooled_ref = pooled_ref.astype(jnp.bfloat16).astype(jnp.float32)
    logits_ref = pooled_ref @ w_bf + cls_b
    ref_idx = jnp.argmax(jax.nn.softmax(logits_ref, axis=-1), axis=-1)
    assert bool(jnp.all(pred_idx == ref_idx)), (pred_idx, ref_idx)

    # Host-side label lookup, exactly like the original forward().
    predicted_labels = [inverted_class_mapping[int(i)] for i in pred_idx]
    assert len(predicted_labels) == B

    print("KERNEL_OK")
</pallas_src>

<mosaic_0001>
module attributes {stable_mosaic.version = 11 : i64} {
  func.func @_cls_kernel(%arg0: i32, %arg1: memref<8x8xi32, #tpu.memory_space<vmem>>, %arg2: memref<128x32xbf16, #tpu.memory_space<vmem>>, %arg3: memref<32x128xbf16, #tpu.memory_space<vmem>>, %arg4: memref<1x128xf32, #tpu.memory_space<vmem>>, %arg5: memref<8x128xi32, #tpu.memory_space<vmem>>) attributes {dimension_semantics = [#tpu.dimension_semantics<parallel>], iteration_bounds = array<i64: 2>, scalar_prefetch = 0 : i64, scratch_operands = 0 : i64, tpu.core_type = #tpu.core_type<tc>, window_params = [{transform_indices = @transform_0, window_bounds = array<i64: 8, 8>}, {pipeline_mode = #tpu.pipeline_mode<synchronous>, transform_indices = @transform_1, window_bounds = array<i64: 128, 32>}, {pipeline_mode = #tpu.pipeline_mode<synchronous>, transform_indices = @transform_2, window_bounds = array<i64: 32, 128>}, {pipeline_mode = #tpu.pipeline_mode<synchronous>, transform_indices = @transform_3, window_bounds = array<i64: 1, 128>}, {transform_indices = @transform_4, window_bounds = array<i64: 8, 128>}]} {
    %c0 = arith.constant 0 : index
    %c0_0 = arith.constant 0 : index
    %0 = vector.load %arg1[%c0, %c0_0] : memref<8x8xi32, #tpu.memory_space<vmem>>, vector<8x8xi32>
    %1 = tpu.iota {dimensions = array<i32: 1>} : vector<8x128xi32>
    %cst = arith.constant 0.000000e+00 : f32
    %2 = vector.broadcast %cst : f32 to vector<8x128xf32>
    %3 = vector.extract_strided_slice %0 {offsets = [0, 0], sizes = [8, 1], strides = [1, 1]} : vector<8x8xi32> to vector<8x1xi32>
    %4 = vector.broadcast %3 : vector<8x1xi32> to vector<8x128xi32>
    %5 = arith.cmpi eq, %4, %1 : vector<8x128xi32>
    %6 = arith.extui %5 : vector<8x128xi1> to vector<8x128xi32>
    %7 = arith.sitofp %6 : vector<8x128xi32> to vector<8x128xf32>
    %8 = arith.addf %2, %7 : vector<8x128xf32>
    %9 = vector.extract_strided_slice %0 {offsets = [0, 1], sizes = [8, 1], strides = [1, 1]} : vector<8x8xi32> to vector<8x1xi32>
    %10 = vector.broadcast %9 : vector<8x1xi32> to vector<8x128xi32>
    %11 = arith.cmpi eq, %10, %1 : vector<8x128xi32>
    %12 = arith.extui %11 : vector<8x128xi1> to vector<8x128xi32>
    %13 = arith.sitofp %12 : vector<8x128xi32> to vector<8x128xf32>
    %14 = arith.addf %8, %13 : vector<8x128xf32>
    %15 = vector.extract_strided_slice %0 {offsets = [0, 2], sizes = [8, 1], strides = [1, 1]} : vector<8x8xi32> to vector<8x1xi32>
    %16 = vector.broadcast %15 : vector<8x1xi32> to vector<8x128xi32>
    %17 = arith.cmpi eq, %16, %1 : vector<8x128xi32>
    %18 = arith.extui %17 : vector<8x128xi1> to vector<8x128xi32>
    %19 = arith.sitofp %18 : vector<8x128xi32> to vector<8x128xf32>
    %20 = arith.addf %14, %19 : vector<8x128xf32>
    %21 = vector.extract_strided_slice %0 {offsets = [0, 3], sizes = [8, 1], strides = [1, 1]} : vector<8x8xi32> to vector<8x1xi32>
    %22 = vector.broadcast %21 : vector<8x1xi32> to vector<8x128xi32>
    %23 = arith.cmpi eq, %22, %1 : vector<8x128xi32>
    %24 = arith.extui %23 : vector<8x128xi1> to vector<8x128xi32>
    %25 = arith.sitofp %24 : vector<8x128xi32> to vector<8x128xf32>
    %26 = arith.addf %20, %25 : vector<8x128xf32>
    %27 = vector.extract_strided_slice %0 {offsets = [0, 4], sizes = [8, 1], strides = [1, 1]} : vector<8x8xi32> to vector<8x1xi32>
    %28 = vector.broadcast %27 : vector<8x1xi32> to vector<8x128xi32>
    %29 = arith.cmpi eq, %28, %1 : vector<8x128xi32>
    %30 = arith.extui %29 : vector<8x128xi1> to vector<8x128xi32>
    %31 = arith.sitofp %30 : vector<8x128xi32> to vector<8x128xf32>
    %32 = arith.addf %26, %31 : vector<8x128xf32>
    %33 = vector.extract_strided_slice %0 {offsets = [0, 5], sizes = [8, 1], strides = [1, 1]} : vector<8x8xi32> to vector<8x1xi32>
    %34 = vector.broadcast %33 : vector<8x1xi32> to vector<8x128xi32>
    %35 = arith.cmpi eq, %34, %1 : vector<8x128xi32>
    %36 = arith.extui %35 : vector<8x128xi1> to vector<8x128xi32>
    %37 = arith.sitofp %36 : vector<8x128xi32> to vector<8x128xf32>
    %38 = arith.addf %32, %37 : vector<8x128xf32>
    %39 = vector.extract_strided_slice %0 {offsets = [0, 6], sizes = [8, 1], strides = [1, 1]} : vector<8x8xi32> to vector<8x1xi32>
    %40 = vector.broadcast %39 : vector<8x1xi32> to vector<8x128xi32>
    %41 = arith.cmpi eq, %40, %1 : vector<8x128xi32>
    %42 = arith.extui %41 : vector<8x128xi1> to vector<8x128xi32>
    %43 = arith.sitofp %42 : vector<8x128xi32> to vector<8x128xf32>
    %44 = arith.addf %38, %43 : vector<8x128xf32>
    %45 = vector.extract_strided_slice %0 {offsets = [0, 7], sizes = [8, 1], strides = [1, 1]} : vector<8x8xi32> to vector<8x1xi32>
    %46 = vector.broadcast %45 : vector<8x1xi32> to vector<8x128xi32>
    %47 = arith.cmpi eq, %46, %1 : vector<8x128xi32>
    %48 = arith.extui %47 : vector<8x128xi1> to vector<8x128xi32>
    %49 = arith.sitofp %48 : vector<8x128xi32> to vector<8x128xf32>
    %50 = arith.addf %44, %49 : vector<8x128xf32>
    %51 = arith.truncf %50 : vector<8x128xf32> to vector<8x128xbf16>
    %c0_1 = arith.constant 0 : index
    %c0_2 = arith.constant 0 : index
    %52 = vector.load %arg2[%c0_1, %c0_2] : memref<128x32xbf16, #tpu.memory_space<vmem>>, vector<128x32xbf16>
    %cst_3 = arith.constant dense<0.000000e+00> : vector<8x32xf32>
    %53 = tpu.matmul %51, %52, %cst_3 {dimension_numbers = #tpu.dot_dimension_numbers<[1], [0], [0], [1], [0, 0, 1, 1], [], []>} : vector<8x128xbf16>, vector<128x32xbf16>, vector<8x32xf32> -> vector<8x32xf32>
    %cst_4 = arith.constant 1.250000e-01 : f32
    %54 = vector.broadcast %cst_4 : f32 to vector<8x32xf32>
    %55 = arith.mulf %53, %54 : vector<8x32xf32>
    %56 = arith.truncf %55 : vector<8x32xf32> to vector<8x32xbf16>
    %c0_5 = arith.constant 0 : index
    %c0_6 = arith.constant 0 : index
    %57 = vector.load %arg3[%c0_5, %c0_6] : memref<32x128xbf16, #tpu.memory_space<vmem>>, vector<32x128xbf16>
    %cst_7 = arith.constant dense<0.000000e+00> : vector<8x128xf32>
    %58 = tpu.matmul %56, %57, %cst_7 {dimension_numbers = #tpu.dot_dimension_numbers<[1], [0], [0], [1], [0, 0, 1, 1], [], []>} : vector<8x32xbf16>, vector<32x128xbf16>, vector<8x128xf32> -> vector<8x128xf32>
    %c0_8 = arith.constant 0 : index
    %c0_9 = arith.constant 0 : index
    %59 = vector.load %arg4[%c0_8, %c0_9] : memref<1x128xf32, #tpu.memory_space<vmem>>, vector<1x128xf32>
    %60 = vector.broadcast %59 : vector<1x128xf32> to vector<8x128xf32>
    %61 = arith.addf %58, %60 : vector<8x128xf32>
    %62 = tpu.iota {dimensions = array<i32: 1>} : vector<8x128xi32>
    %cst_10 = arith.constant dense<0xFF800000> : vector<8xf32>
    %63 = vector.multi_reduction <maximumf>, %61, %cst_10 [1] : vector<8x128xf32> to vector<8xf32>
    %64 = vector.shape_cast %63 : vector<8xf32> to vector<8x1xf32>
    %65 = vector.broadcast %64 : vector<8x1xf32> to vector<8x128xf32>
    %66 = arith.cmpf oeq, %61, %65 : vector<8x128xf32>
    %c128_i32 = arith.constant 128 : i32
    %67 = vector.broadcast %c128_i32 : i32 to vector<8x128xi32>
    %68 = arith.select %66, %62, %67 : vector<8x128xi1>, vector<8x128xi32>
    %cst_11 = arith.constant dense<2147483647> : vector<8xi32>
    %69 = vector.multi_reduction <minsi>, %68, %cst_11 [1] : vector<8x128xi32> to vector<8xi32>
    %70 = vector.shape_cast %69 : vector<8xi32> to vector<8x1xi32>
    %71 = vector.shape_cast %70 : vector<8x1xi32> to vector<8x1xi32>
    %72 = vector.broadcast %71 : vector<8x1xi32> to vector<8x128xi32>
    %c0_12 = arith.constant 0 : index
    %c0_13 = arith.constant 0 : index
    %73 = vector.load %arg5[%c0_12, %c0_13] : memref<8x128xi32, #tpu.memory_space<vmem>>, vector<8x128xi32>
    tpu.vector_store %arg5[%c0_12, %c0_13], %72 {strides = array<i32>} : memref<8x128xi32, #tpu.memory_space<vmem>>, vector<8x128xi32>,
    return
  }
  func.func @transform_0(%arg0: i32) -> (i32, i32) {
    %c0_i32 = arith.constant 0 : i32
    %c0_i32_0 = arith.constant 0 : i32
    return %arg0, %c0_i32 : i32, i32
  }
  func.func @transform_1(%arg0: i32) -> (i32, i32) {
    %c0_i32 = arith.constant 0 : i32
    %c0_i32_0 = arith.constant 0 : i32
    %c0_i32_1 = arith.constant 0 : i32
    return %c0_i32, %c0_i32_0 : i32, i32
  }
  func.func @transform_2(%arg0: i32) -> (i32, i32) {
    %c0_i32 = arith.constant 0 : i32
    %c0_i32_0 = arith.constant 0 : i32
    %c0_i32_1 = arith.constant 0 : i32
    return %c0_i32, %c0_i32_0 : i32, i32
  }
  func.func @transform_3(%arg0: i32) -> (i32, i32) {
    %c0_i32 = arith.constant 0 : i32
    %c0_i32_0 = arith.constant 0 : i32
    %c0_i32_1 = arith.constant 0 : i32
    return %c0_i32, %c0_i32_0 : i32, i32
  }
  func.func @transform_4(%arg0: i32) -> (i32, i32) {
    %c0_i32 = arith.constant 0 : i32
    %c0_i32_0 = arith.constant 0 : i32
    return %arg0, %c0_i32 : i32, i32
  }
}

</mosaic_0001>

<llo_original>
// kernel: tpu_custom_call.1
$region0: #{tpu_custom_call.1}
  #allocation0 [shape = 'u32[]', space=smem, size = 0x4, offset = 0x4, fixed_abs, tag = 'smem constant byte address 0x4 - core index']
  #allocation1 [shape = 'u32[144,128]{1,0:T(1,128)}', space=vmem, size = 0x12000, scoped, tag = 'internal scratch']
  %s0 = inlined_call_operand.vmem [shape: s32[16,8], index: 0, kind: input, shape index: {}]
  %s1 = inlined_call_operand.vmem [shape: bf16[128,32], index: 1, kind: input, shape index: {}]
  %s2 = inlined_call_operand.vmem [shape: bf16[32,128], index: 2, kind: input, shape index: {}]
  %s3 = inlined_call_operand.vmem [shape: f32[1,128], index: 3, kind: input, shape index: {}]
  %s4 = inlined_call_operand.hbm [shape: s32[16,128], index: 4, kind: output, shape index: {}]
  %s5 = sld [smem:[#allocation0]]
  $region49: #{tpu_custom_call.1} parent=0
    _
  %s7 = ssub.s32 1, %s5
  %s8 = scalar_select 0, %s7, %s5
  $region1: #{tpu_custom_call.1} parent=0
    #allocation2 [shape = 'u8[8192]{0}', space=vmem, size = 0x2000, scoped, tag = 'output window, operand 0']
    #allocation3 [shape = 's32[2]{0}', space=sflag, size = 0x8, scoped, tag = 'scoped memory for tpu_custom_call.1']
    %9 = vsyncpa [#allocation3], 0
    %s10 = scalar_lea.sflag [#allocation3], 1
    %11 = vsyncpa %s10, 0
    loop: start=0, step=1, limit=4
    $region2: #{tpu_custom_call.1} parent=1 // loop_pre_header
      _
    $region3: #{tpu_custom_call.1} parent=1 // loop_header
      %s13 = sphi 0, %s17
      %p14 = scmp.ge.s32.totalorder %s13, 4
      %s23 = sphi 0, %s25
      %s26 = sphi 0, %s23
      %s27 = sphi 0, %s26
      %s43 = sphi 0, %s27
      %s47 = sphi 0, %s47
      %s49 = sphi 0, %s47
      %s50 = sphi 0, %s49
      %s64 = sphi 0, %s50
      %s68 = sphi 0, %s68
      %s70 = sphi 0, %s68
      %s71 = sphi 0, %s70
      %s85 = sphi 0, %s71
      %s89 = sphi 0, %s89
      %s91 = sphi 0, %s89
      %s92 = sphi 0, %s91
      %s106 = sphi 0, %s92
      %s112 = sphi 0, %s114
      %s115 = sphi 0, %s112
      %s116 = sphi 0, %s115
      %s132 = sphi 0, %s116
    $region4: #{tpu_custom_call.1} parent=1 // loop_header_branch
      %16 = sbr.rel (%p14) target = $region8
    $region5: #{tpu_custom_call.1} parent=1 // loop_body
      %s18 = ssub.s32 %s13, 1
      %s19 = ssub.s32 %s13, 2
      %s20 = sadd.s32 %s13, 1
      %s21 = ssub.s32 %s13, %s20
      %p22 = scmp.eq.s32.totalorder %s21, 0
      %s24 = sadd.s32 %s23, 1
      %s25 = scalar_select %p22, %s23, %s24
      %p28 = pneg %p22
      %p29 = scmp.eq.s32.totalorder %s13, 1
      %p30 = por %p28, %p29
      %p31 = scmp.ne.s32.totalorder %s23, %s26
      %p32 = scmp.eq.s32.totalorder %s13, 0
      %p33 = por %p31, %p32
      %p34 = scmp.ne.s32.totalorder %s23, %s26
      %p35 = scmp.eq.s32.totalorder %s18, 1
      %p36 = por %p34, %p35
      %p37 = scmp.ne.s32.totalorder %s26, %s27
      %p38 = scmp.eq.s32.totalorder %s18, 0
      %p39 = por %p37, %p38
      %p40 = scmp.ne.s32.totalorder %s26, %s27
      %p41 = scmp.eq.s32.totalorder %s19, 1
      %p42 = por %p40, %p41
      %p44 = scmp.ne.s32.totalorder %s27, %s43
      %p45 = scmp.eq.s32.totalorder %s19, 0
      %p46 = por %p44, %p45
      %s48 = sadd.s32 %s47, 1
      %p51 = scmp.eq.s32.totalorder %s13, 1
      %p52 = scmp.ne.s32.totalorder %s47, %s49
      %p53 = scmp.eq.s32.totalorder %s13, 0
      %p54 = por %p52, %p53
      %p55 = scmp.ne.s32.totalorder %s47, %s49
      %p56 = scmp.eq.s32.totalorder %s18, 1
      %p57 = por %p55, %p56
      %p58 = scmp.ne.s32.totalorder %s49, %s50
      %p59 = scmp.eq.s32.totalorder %s18, 0
      %p60 = por %p58, %p59
      %p61 = scmp.ne.s32.totalorder %s49, %s50
      %p62 = scmp.eq.s32.totalorder %s19, 1
      %p63 = por %p61, %p62
      %p65 = scmp.ne.s32.totalorder %s50, %s64
      %p66 = scmp.eq.s32.totalorder %s19, 0
      %p67 = por %p65, %p66
      %s69 = sadd.s32 %s68, 1
      %p72 = scmp.eq.s32.totalorder %s13, 1
      %p73 = scmp.ne.s32.totalorder %s68, %s70
      %p74 = scmp.eq.s32.totalorder %s13, 0
      %p75 = por %p73, %p74
      %p76 = scmp.ne.s32.totalorder %s68, %s70
      %p77 = scmp.eq.s32.totalorder %s18, 1
      %p78 = por %p76, %p77
      %p79 = scmp.ne.s32.totalorder %s70, %s71
      %p80 = scmp.eq.s32.totalorder %s18, 0
      %p81 = por %p79, %p80
      %p82 = scmp.ne.s32.totalorder %s70, %s71
      %p83 = scmp.eq.s32.totalorder %s19, 1
      %p84 = por %p82, %p83
      %p86 = scmp.ne.s32.totalorder %s71, %s85
      %p87 = scmp.eq.s32.totalorder %s19, 0
      %p88 = por %p86, %p87
      %s90 = sadd.s32 %s89, 1
      %p93 = scmp.eq.s32.totalorder %s13, 1
      %p94 = scmp.ne.s32.totalorder %s89, %s91
      %p95 = scmp.eq.s32.totalorder %s13, 0
      %p96 = por %p94, %p95
      %p97 = scmp.ne.s32.totalorder %s89, %s91
      %p98 = scmp.eq.s32.totalorder %s18, 1
      %p99 = por %p97, %p98
      %p100 = scmp.ne.s32.totalorder %s91, %s92
      %p101 = scmp.eq.s32.totalorder %s18, 0
      %p102 = por %p100, %p101
      %p103 = scmp.ne.s32.totalorder %s91, %s92
      %p104 = scmp.eq.s32.totalorder %s19, 1
      %p105 = por %p103, %p104
      %p107 = scmp.ne.s32.totalorder %s92, %s106
      %p108 = scmp.eq.s32.totalorder %s19, 0
      %p109 = por %p107, %p108
      %s110 = ssub.s32 %s13, %s20
      %p111 = scmp.eq.s32.totalorder %s110, 0
      %s113 = sadd.s32 %s112, 1
      %s114 = scalar_select %p111, %s112, %s113
      %p117 = pneg %p111
      %p118 = scmp.eq.s32.totalorder %s13, 1
      %p119 = por %p117, %p118
      %p120 = scmp.ne.s32.totalorder %s112, %s115
      %p121 = scmp.eq.s32.totalorder %s13, 0
      %p122 = por %p120, %p121
      %p123 = scmp.ne.s32.totalorder %s112, %s115
      %p124 = scmp.eq.s32.totalorder %s18, 1
      %p125 = por %p123, %p124
      %p126 = scmp.ne.s32.totalorder %s115, %s116
      %p127 = scmp.eq.s32.totalorder %s18, 0
      %p128 = por %p126, %p127
      %p129 = scmp.ne.s32.totalorder %s115, %s116
      %p130 = scmp.eq.s32.totalorder %s19, 1
      %p131 = por %p129, %p130
      %p133 = scmp.ne.s32.totalorder %s116, %s132
      %p134 = scmp.eq.s32.totalorder %s19, 0
      %p135 = por %p133, %p134
      %p136 = scmp.le.s32.totalorder 1, %s13
      %p137 = scmp.lt.s32.totalorder %s13, 3
      %p138 = pnand %p136, %p137
      %p139 = pneg %p138
      // Predicated region
      $region9: #{tpu_custom_call.1} parent=5 // pred_check
        _
      $region10: #{tpu_custom_call.1} parent=5 // pred_check_branch
        %141 = sbr.rel (%p138) target = $region12
      $region11: #{tpu_custom_call.1} parent=5 // pred_region
        %s142 = ssub.s32 %s13, 1
        // Predicated region
        $region13: #{tpu_custom_call.1} parent=11 // pred_check
          %p143 = pneg %p60
        $region14: #{tpu_custom_call.1} parent=11 // pred_check_branch
          %145 = sbr.rel (%p143) target = $region16
        $region15: #{tpu_custom_call.1} parent=11 // pred_region
          _
        $region16: #{tpu_custom_call.1} parent=11 // pred_fallthru
          _
        // Predicated region
        $region17: #{tpu_custom_call.1} parent=11 // pred_check
          %p146 = pneg %p81
        $region18: #{tpu_custom_call.1} parent=11 // pred_check_branch
          %148 = sbr.rel (%p146) target = $region20
        $region19: #{tpu_custom_call.1} parent=11 // pred_region
          _
        $region20: #{tpu_custom_call.1} parent=11 // pred_fallthru
          _
        // Predicated region
        $region21: #{tpu_custom_call.1} parent=11 // pred_check
          %p149 = pneg %p102
        $region22: #{tpu_custom_call.1} parent=11 // pred_check_branch
          %151 = sbr.rel (%p149) target = $region24
        $region23: #{tpu_custom_call.1} parent=11 // pred_region
          _
        $region24: #{tpu_custom_call.1} parent=11 // pred_fallthru
          _
      $region12: #{tpu_custom_call.1} parent=5 // pred_fallthru
        _
      %p152 = scmp.lt.s32.totalorder %s13, 2
      // Predicated region
      $region25: #{tpu_custom_call.1} parent=5 // pred_check
        %p153 = pneg %p152
      $region26: #{tpu_custom_call.1} parent=5 // pred_check_branch
        %155 = sbr.rel (%p153) target = $region28
      $region27: #{tpu_custom_call.1} parent=5 // pred_region
        // Predicated region
        $region29: #{tpu_custom_call.1} parent=27 // pred_check
          %p156 = pneg %p33
        $region30: #{tpu_custom_call.1} parent=27 // pred_check_branch
          %158 = sbr.rel (%p156) target = $region32
        $region31: #{tpu_custom_call.1} parent=27 // pred_region
          %p159 = scmp.lt.s32.totalorder %s13, 1
          %s160 = scalar_select %p159, %s13, 1
          %s161 = smul.addr %s160, 8
          %s162 = scalar_lea.vmem %s0, %s161
        $region32: #{tpu_custom_call.1} parent=27 // pred_fallthru
          _
      $region28: #{tpu_custom_call.1} parent=5 // pred_fallthru
        _
      %p163 = scmp.le.s32.totalorder 1, %s13
      %p164 = scmp.lt.s32.totalorder %s13, 3
      %p165 = pnand %p163, %p164
      %p166 = pneg %p165
      // Predicated region
      $region33: #{tpu_custom_call.1} parent=5 // pred_check
        _
      $region34: #{tpu_custom_call.1} parent=5 // pred_check_branch
        %168 = sbr.rel (%p165) target = $region36
      $region35: #{tpu_custom_call.1} parent=5 // pred_region
        %s169 = ssub.s32 %s13, 1
        %p170 = scmp.lt.s32.totalorder %s18, 1
        %s171 = scalar_select %p170, %s18, 1
        %s172 = smul.addr %s171, 8
        %s173 = scalar_lea.vmem %s0, %s172
        %p174 = pneg %p39
        %p175 = pneg %p36
        %p176 = pneg %p60
        %p177 = pneg %p57
        %p178 = pneg %p81
        %p179 = pneg %p78
        %p180 = pneg %p102
        %p181 = pneg %p99
        %p182 = pneg %p128
        %p183 = pneg %p125
        %s184 = sand.u32 %s115, 1
        %s185 = scalar_lea.sflag [#allocation3], %s184
        %s186 = sand.u32 %s115, 1
        %s187 = smul.addr %s186, 8
        %s188 = scalar_lea.vmem [#allocation2], %s187
        %p189 = scmp.lt.s32.totalorder %s18, 1
        %s190 = scalar_select %p189, %s18, 1
        %s191 = smul.addr %s190, 8
        %s192 = scalar_lea.vmem %s0, %s191
        %v194 = vld [vmem:[%s192] sm:$0xff]
        %v195 = vlaneseq
        %v196 = vand.u32 %v195, 127
        %197 = vset.pattern.permute.xlu0 0
        %198 = vperm.xlu0 %197, %v194
        %v199 = vpop.permute.xlu0 %198
        %vm200 = vcmp.eq.s32.totalorder %v199, %v196
        %v201 = vsel %vm200, 1, 0
        %v202 = vcvt.s32.f32 %v201
        %v203 = vadd.f32 %v202, 0.0
        %204 = vset.pattern.permute.xlu0 1
        %205 = vperm.xlu0 %204, %v194
        %v206 = vpop.permute.xlu0 %205
        %vm207 = vcmp.eq.s32.totalorder %v206, %v196
        %v208 = vsel %vm207, 1, 0
        %v209 = vcvt.s32.f32 %v208
        %v210 = vadd.f32 %v203, %v209
        %211 = vset.pattern.permute.xlu0 2
        %212 = vperm.xlu0 %211, %v194
        %v213 = vpop.permute.xlu0 %212
        %vm214 = vcmp.eq.s32.totalorder %v213, %v196
        %v215 = vsel %vm214, 1, 0
        %v216 = vcvt.s32.f32 %v215
        %v217 = vadd.f32 %v210, %v216
        %218 = vset.pattern.permute.xlu0 3
        %219 = vperm.xlu0 %218, %v194
        %v220 = vpop.permute.xlu0 %219
        %vm221 = vcmp.eq.s32.totalorder %v220, %v196
        %v222 = vsel %vm221, 1, 0
        %v223 = vcvt.s32.f32 %v222
        %v224 = vadd.f32 %v217, %v223
        %225 = vset.pattern.permute.xlu0 4
        %226 = vperm.xlu0 %225, %v194
        %v227 = vpop.permute.xlu0 %226
        %vm228 = vcmp.eq.s32.totalorder %v227, %v196
        %v229 = vsel %vm228, 1, 0
        %v230 = vcvt.s32.f32 %v229
        %v231 = vadd.f32 %v224, %v230
        %232 = vset.pattern.permute.xlu0 5
        %233 = vperm.xlu0 %232, %v194
        %v234 = vpop.permute.xlu0 %233
        %vm235 = vcmp.eq.s32.totalorder %v234, %v196
        %v236 = vsel %vm235, 1, 0
        %v237 = vcvt.s32.f32 %v236
        %v238 = vadd.f32 %v231, %v237
        %239 = vset.pattern.permute.xlu0 6
        %240 = vperm.xlu0 %239, %v194
        %v241 = vpop.permute.xlu0 %240
        %vm242 = vcmp.eq.s32.totalorder %v241, %v196
        %v243 = vsel %vm242, 1, 0
        %v244 = vcvt.s32.f32 %v243
        %v245 = vadd.f32 %v238, %v244
        %246 = vset.pattern.permute.xlu0 7
        %247 = vperm.xlu0 %246, %v194
        %v248 = vpop.permute.xlu0 %247
        %vm249 = vcmp.eq.s32.totalorder %v248, %v196
        %v250 = vsel %vm249, 1, 0
        %v251 = vcvt.s32.f32 %v250
        %v252 = vadd.f32 %v245, %v251
        %v253 = vpack.c.bf16 %v252, %v252
        %v254 = vld [vmem:[%s1] sm:$0xf]
        %v255 = vld [vmem:[%s1 + $0x4] sm:$0xf]
        %v256 = vld [vmem:[%s1 + $0x8] sm:$0xf]
        %v257 = vld [vmem:[%s1 + $0xc] sm:$0xf]
        %v258 = vld [vmem:[%s1 + $0x10] sm:$0xf]
        %v259 = vld [vmem:[%s1 + $0x14] sm:$0xf]
        %v260 = vld [vmem:[%s1 + $0x18] sm:$0xf]
        %v261 = vld [vmem:[%s1 + $0x1c] sm:$0xf]
        %v262 = vld [vmem:[%s1 + $0x20] sm:$0xf]
        %v263 = vld [vmem:[%s1 + $0x24] sm:$0xf]
        %v264 = vld [vmem:[%s1 + $0x28] sm:$0xf]
        %v265 = vld [vmem:[%s1 + $0x2c] sm:$0xf]
        %v266 = vld [vmem:[%s1 + $0x30] sm:$0xf]
        %v267 = vld [vmem:[%s1 + $0x34] sm:$0xf]
        %v268 = vld [vmem:[%s1 + $0x38] sm:$0xf]
        %v269 = vld [vmem:[%s1 + $0x3c] sm:$0xf]
        %v286 = vunpack.c.l.b16 %v254
        %v287 = vunpack.c.l.b16 %v255
        %v288 = vunpack.c.l.b16 %v256
        %v289 = vunpack.c.l.b16 %v257
        %v290 = vunpack.c.l.b16 %v258
        %v291 = vunpack.c.l.b16 %v259
        %v292 = vunpack.c.l.b16 %v260
        %v293 = vunpack.c.l.b16 %v261
        %v294 = vunpack.c.l.b16 %v262
        %v295 = vunpack.c.l.b16 %v263
        %v296 = vunpack.c.l.b16 %v264
        %v297 = vunpack.c.l.b16 %v265
        %v298 = vunpack.c.l.b16 %v266
        %v299 = vunpack.c.l.b16 %v267
        %v300 = vunpack.c.l.b16 %v268
        %v301 = vunpack.c.l.b16 %v269
        %v302 = vpack.c.b16 %v287, %v286
        %v303 = vpack.c.b16 %v289, %v288
        %v304 = vpack.c.b16 %v291, %v290
        %v305 = vpack.c.b16 %v293, %v292
        %v306 = vpack.c.b16 %v295, %v294
        %v307 = vpack.c.b16 %v297, %v296
        %v308 = vpack.c.b16 %v299, %v298
        %v309 = vpack.c.b16 %v301, %v300
        %318 = vmatprep.subr.bf16.mxu0 0
        %319 = vmatpush1.bf16.msra.mxu0 %v302
        %320 = vmatprep.subr.bf16.mxu0 0
        %321 = vmatpush1.bf16.msra.mxu0 %v303
        %322 = vmatprep.subr.bf16.mxu0 0
        %323 = vmatpush1.bf16.msra.mxu0 %v304
        %324 = vmatprep.subr.bf16.mxu0 0
        %325 = vmatpush1.bf16.msra.mxu0 %v305
        %326 = vmatprep.subr.bf16.mxu0 0
        %327 = vmatpush1.bf16.msra.mxu0 %v306
        %328 = vmatprep.subr.bf16.mxu0 0
        %329 = vmatpush1.bf16.msra.mxu0 %v307
        %330 = vmatprep.subr.bf16.mxu0 0
        %331 = vmatpush1.bf16.msra.mxu0 %v308
        %332 = vmatprep.subr.bf16.mxu0 0
        %333 = vmatpush1.bf16.msra.mxu0 %v309
        %334 = vmatprep.subr.bf16.mxu0 0
        %335 = vmatpush1.bf16.msra.mxu0 0
        %336 = vmatprep.subr.bf16.mxu0 0
        %337 = vmatpush1.bf16.msra.mxu0 0
        %338 = vmatprep.subr.bf16.mxu0 0
        %339 = vmatpush1.bf16.msra.mxu0 0
        %340 = vmatprep.subr.bf16.mxu0 0
        %341 = vmatpush1.bf16.msra.mxu0 0
        %342 = vmatprep.subr.bf16.mxu0 0
        %343 = vmatpush1.bf16.msra.mxu0 0
        %344 = vmatprep.subr.bf16.mxu0 0
        %345 = vmatpush1.bf16.msra.mxu0 0
        %346 = vmatprep.subr.bf16.mxu0 0
        %347 = vmatpush1.bf16.msra.mxu0 0
        %348 = vmatprep.subr.bf16.mxu0 0
        %349 = vmatpush1.bf16.msra.mxu0 0
        %350 = vmatprep.mubr.bf16.mxu0 0
        %351 = vmatmul.mubr.bf16.gmra.mrb[0].mxu0 %v253
        %v352 = vpop.f32.mrb[0].mxu0
        %v353 = vadd.f32 0.0, %v352
        %v354 = vpop.f32.mrb[0].mxu0
        %v355 = vpop.f32.mrb[0].mxu0
        %v356 = vpop.f32.mrb[0].mxu0
        %357 = vdwg.mxu0
        %v358 = vmul.f32 %v353, 0.125
        %v359 = vpack.c.bf16 %v358, %v358
        %v360 = vld [vmem:[%s2] sm:$0xf]
        %v361 = vld [vmem:[%s2 + $0x4] sm:$0xf]
        %v362 = vld [vmem:[%s2 + $0x8] sm:$0xf]
        %v363 = vld [vmem:[%s2 + $0xc] sm:$0xf]
        %v364 = vld [vmem:[%s3] sm:$0x1]
        %v366 = vlaneseq
        %v367 = vshrl.u32 %v366, 7
        %v368 = vsub.s32 0, %v367
        %v369 = vrot.slane %v364, %v368
        %v375 = vunpack.c.l.b16 %v360
        %v376 = vunpack.c.l.b16 %v361
        %v377 = vunpack.c.l.b16 %v362
        %v378 = vunpack.c.l.b16 %v363
        %v379 = vpack.c.b16 %v376, %v375
        %v380 = vpack.c.b16 %v378, %v377
        %vm383 = vcmask 261120
        %v385 = vsel %vm383, %v359, 0
        %387 = vmatprep.subr.bf16.mxu0 0
        %388 = vmatpush1.bf16.msra.mxu0 %v379
        %389 = vmatprep.subr.bf16.mxu0 0
        %390 = vmatpush1.bf16.msra.mxu0 %v380
        %391 = vmatprep.subr.bf16.mxu0 0
        %392 = vmatpush1.bf16.msra.mxu0 0
        %393 = vmatprep.subr.bf16.mxu0 0
        %394 = vmatpush1.bf16.msra.mxu0 0
        %395 = vmatprep.subr.bf16.mxu0 0
        %396 = vmatpush1.bf16.msra.mxu0 0
        %397 = vmatprep.subr.bf16.mxu0 0
        %398 = vmatpush1.bf16.msra.mxu0 0
        %399 = vmatprep.subr.bf16.mxu0 0
        %400 = vmatpush1.bf16.msra.mxu0 0
        %401 = vmatprep.subr.bf16.mxu0 0
        %402 = vmatpush1.bf16.msra.mxu0 0
        %403 = vmatprep.subr.bf16.mxu0 0
        %404 = vmatpush1.bf16.msra.mxu0 0
        %405 = vmatprep.subr.bf16.mxu0 0
        %406 = vmatpush1.bf16.msra.mxu0 0
        %407 = vmatprep.subr.bf16.mxu0 0
        %408 = vmatpush1.bf16.msra.mxu0 0
        %409 = vmatprep.subr.bf16.mxu0 0
        %410 = vmatpush1.bf16.msra.mxu0 0
        %411 = vmatprep.subr.bf16.mxu0 0
        %412 = vmatpush1.bf16.msra.mxu0 0
        %413 = vmatprep.subr.bf16.mxu0 0
        %414 = vmatpush1.bf16.msra.mxu0 0
        %415 = vmatprep.subr.bf16.mxu0 0
        %416 = vmatpush1.bf16.msra.mxu0 0
        %417 = vmatprep.subr.bf16.mxu0 0
        %418 = vmatpush1.bf16.msra.mxu0 0
        %419 = vmatprep.mubr.bf16.mxu0 0
        %420 = vmatmul.mubr.bf16.gmra.mrb[0].mxu0 %v385
        %v421 = vpop.f32.mrb[0].mxu0
        %v422 = vadd.f32 %v369, %v421
        %v423 = vpop.f32.mrb[0].mxu0
        %v424 = vpop.f32.mrb[0].mxu0
        %v425 = vpop.f32.mrb[0].mxu0
        %426 = vdwg.mxu0
        %427 = vmax.xlane.f32.xlu0 %v422
        %v428 = vpop.xlane.xlu0 %427
        %vm429 = vcmp.eq.f32.partialorder %v422, %v428
        %v430 = vsel %vm429, %v196, 128
        %v431 = vand.u32 %v430, 65535
        %v432 = vshra.s32 %v430, 16
        %v433 = vcvt.s32.f32 %v431
        %v434 = vcvt.s32.f32 %v432
        %435 = vmin.xlane.f32.xlu0 %v434
        %v436 = vpop.xlane.xlu0 %435
        %vm437 = vcmp.eq.f32.partialorder %v434, %v436
        %v438 = vsel %vm437, %v433, inf
        %439 = vmin.xlane.f32.xlu0 %v438
        %v440 = vpop.xlane.xlu0 %439
        %v441 = vcvt.f32.s32 %v440
        %v442 = vcvt.f32.s32 %v436
        %v443 = vshll.u32 %v442, 16
        %v444 = vadd.s32 %v443, %v441
        %445 = vst [vmem:[%s188] sm:$0xff] %v444
        %s446 = sand.u32 %s115, 1
        %s447 = scalar_lea.sflag [#allocation3], %s446
        %s448 = sand.u32 %s115, 1
        %s449 = smul.addr %s448, 8
        %s450 = scalar_lea.vmem [#allocation2], %s449
        // Predicated region
        $region37: #{tpu_custom_call.1} parent=35 // pred_check
          %p451 = pneg %p125
        $region38: #{tpu_custom_call.1} parent=35 // pred_check_branch
          %453 = sbr.rel (%p451) target = $region40
        $region39: #{tpu_custom_call.1} parent=35 // pred_region
          %s455 = ssub.s32 128, 128
          %456 = vsyncadd %s447, %s455
          %s457 = smul.addr %s18, 128
          %s458 = scalar_lea.hbm %s4, %s457
          %s460 = sshll.u32 %s450, 4
          %s461 = int_to_ptr.vmem [resolvable:$true] %s460
          %463 = dma.vmem_to_hbm [thread:$0]  %s461, 128, %s458, %s447
        $region40: #{tpu_custom_call.1} parent=35 // pred_fallthru
          _
      $region36: #{tpu_custom_call.1} parent=5 // pred_fallthru
        _
      %p464 = scmp.le.s32.totalorder 2, %s13
      // Predicated region
      $region41: #{tpu_custom_call.1} parent=5 // pred_check
        %p465 = pneg %p464
      $region42: #{tpu_custom_call.1} parent=5 // pred_check_branch
        %467 = sbr.rel (%p465) target = $region44
      $region43: #{tpu_custom_call.1} parent=5 // pred_region
        %s468 = ssub.s32 %s13, 2
        // Predicated region
        $region45: #{tpu_custom_call.1} parent=43 // pred_check
          %p469 = pneg %p131
        $region46: #{tpu_custom_call.1} parent=43 // pred_check_branch
          %471 = sbr.rel (%p469) target = $region48
        $region47: #{tpu_custom_call.1} parent=43 // pred_region
          %s472 = sand.u32 %s116, 1
          %s473 = scalar_lea.sflag [#allocation3], %s472
          %s474 = sand.u32 %s116, 1
          %s475 = smul.addr %s474, 8
          %s476 = scalar_lea.vmem [#allocation2], %s475
          %477 = dma.done %s473, 128
        $region48: #{tpu_custom_call.1} parent=43 // pred_fallthru
          _
      $region44: #{tpu_custom_call.1} parent=5 // pred_fallthru
        _
    $region6: #{tpu_custom_call.1} parent=1 // loop_footer
      %s17 = sadd.s32 1, %s13
    $region7: #{tpu_custom_call.1} parent=1 // loop_footer_branch
      %12 = sbr.rel target = $region3
    $region8: #{tpu_custom_call.1} parent=1 // loop_exit
      _
    %478 = vsyncpa [#allocation3], 1
    %s479 = scalar_lea.sflag [#allocation3], 1
    %480 = vsyncpa %s479, 1

</llo_original>
